<compile_context>
chip_gen: v6e
topology: v6e:2x2x1
jax: 0.10.0
libtpu: 0.0.40
codegen_flags: <defaults>
</compile_context>

<pallas_src>
import jax
import jax.numpy as jnp
from jax.experimental import pallas as pl
from jax.experimental.pallas import tpu as pltpu


def _sia_kernel(w1_ref, b1_ref, x_ref, a_ref, o_ref, z_ref):
    """One batch block per grid step.

    w1_ref : SMEM f32[C]            -- 1x1 attconv weights
    b1_ref : SMEM f32[1]            -- 1x1 attconv bias
    x_ref  : VMEM   [Nb, C*S]       -- input block in native dtype (NCHW view)
    a_ref  : VMEM f32[2*S, S]       -- fused conv operator [A0; A1]
    o_ref  : VMEM   [Nb, S]         -- output block (lane-dense)
    z_ref  : VMEM f32[Nb, 2*S]      -- scratch slab holding [fm | maxout]
    """
    C = w1_ref.shape[0]
    S = o_ref.shape[-1]

    # Channel max + 1x1 conv over C on the VPU.  Channel c is a static
    # lane-slice of the (Nb, C*S) block -> no relayout, no wrapper transpose.
    # Upcast to f32 happens here (after the VMEM load), not in HBM.
    # For C in the tens-to-hundreds this should become an MXU contraction
    # over a channels-last tile; for the small C of this head it is fine.
    x0 = x_ref[:, :S].astype(jnp.float32)
    maxout = x0
    fm = x0 * w1_ref[0]
    for c in range(1, C):
        xc = x_ref[:, c * S:(c + 1) * S].astype(jnp.float32)
        maxout = jnp.maximum(maxout, xc)
        fm = fm + xc * w1_ref[c]
    fm = fm + b1_ref[0]

    # KxK zero-padded cross-correlation (PyTorch conv2d, no flip) as a single
    # fused MXU matmul against the precomputed stacked operator [A0; A1].
    z_ref[:, :S] = fm
    z_ref[:, S:] = maxout
    y = jnp.dot(z_ref[...], a_ref[...], preferred_element_type=jnp.float32)

    o_ref[...] = jax.nn.sigmoid(y).astype(o_ref.dtype)


def _fused_conv_operator(w_conv, H, W, K, P):
    """Re-lay the (1,2,K,K) conv weights as one stacked (2*H*W, H*W) operator.

    A_c[p_in, q_out] = w_conv[0, c, h_in - h_out + P, w_in - w_out + P] when
    that tap lies inside the KxK window, else 0, so that
        y_flat = fm_flat @ A0 + max_flat @ A1 = [fm | max] @ [A0; A1]
    equals the zero-padded KxK cross-correlation of cat[fm, maxout].
    Weight-only transform; done once in the wrapper.  Kept in f32 (a bf16
    operator would roughly halve operator VMEM/DMA and speed the MXU on
    v6e/v7x but needs the 1e-4 tolerance re-validated).
    """
    wk = w_conv.reshape(2, K, K).astype(jnp.float32)
    hh = jnp.arange(H)
    ww = jnp.arange(W)
    dy = hh[:, None] - hh[None, :] + P            # (H_in, H_out)
    dx = ww[:, None] - ww[None, :] + P            # (W_in, W_out)
    vy = (dy >= 0) & (dy < K)
    vx = (dx >= 0) & (dx < K)
    dyc = jnp.clip(dy, 0, K - 1)
    dxc = jnp.clip(dx, 0, K - 1)
    taps = wk[:, dyc[:, :, None, None], dxc[None, None, :, :]]   # (2,H,H,W,W)
    mask = vy[:, :, None, None] & vx[None, None, :, :]           # (H,H,W,W)
    taps = jnp.where(mask[None], taps, 0.0)
    # (c, h_in, h_out, w_in, w_out) -> (c, (h_in, w_in), (h_out, w_out))
    a = taps.transpose(0, 1, 3, 2, 4).reshape(2, H * W, H * W)
    return a.reshape(2 * H * W, H * W)            # [A0; A1]


def _round_up(n, m):
    return ((n + m - 1) // m) * m


def _choose_blocks(n, target=256):
    """(num_blocks, rows_per_block): large blocks, N padded up (no divisor
    search), block rows a multiple of 8 (f32 sublane)."""
    if _round_up(n, 8) <= target:
        return 1, _round_up(n, 8)                 # whole (padded) batch
    n_blocks = -(-n // target)                    # ceil
    nb = _round_up(-(-n // n_blocks), 8)
    return -(-n // nb), nb


def spatial_integration_attention(x, w_att, b_att, w_conv, kernel_size=7):
    """x: [N, C, H, W] (NCHW). Returns sigmoid attention map [N, 1, H, W]."""
    assert kernel_size in (3, 7), "kernel size must be 3 or 7"
    N, C, H, W = x.shape
    K = kernel_size
    P = 3 if K == 7 else 1
    S = H * W

    # Weight-only prep (tiny; no activation HBM traffic).
    w1 = w_att.reshape(C).astype(jnp.float32)         # (1,C,1,1) -> (C,)
    b1 = b_att.reshape(1).astype(jnp.float32)         # (1,)
    A = _fused_conv_operator(w_conv, H, W, K, P)      # (2S, S)

    op_bytes = 2 * S * S * 4
    # TODO(synk): for large H*W (dense operator beyond ~24 MiB, i.e. S ~ 3k,
    # which no longer fits v7x's 64 MiB VMEM) switch to a banded/shift
    # formulation (per-tap pltpu.roll on the XLU + VPU accumulate) or tile the
    # operator's output columns across a second grid axis.
    assert op_bytes <= (24 << 20), "dense conv operator too large for VMEM"

    NB, Nb = _choose_blocks(N)
    Np = NB * Nb

    # Natural NCHW layout flattened to (N, C*S): contiguous reshape (layout
    # plumbing only — no HBM transpose) and NO dtype cast in the wrapper.
    x2 = x.reshape(N, C * S)
    if Np != N:
        x2 = jnp.pad(x2, ((0, Np - N), (0, 0)))       # pad batch to block mult

    # Explicit VMEM budget: resident operator (2 bufs by default) +
    # double-buffered x/out blocks + [fm|maxout] slab + temporaries + headroom.
    x_bytes = jnp.dtype(x.dtype).itemsize
    budget = (2 * Nb * C * S * x_bytes
              + 2 * Nb * S * x_bytes
              + 2 * op_bytes
              + Nb * 2 * S * 4
              + 6 * Nb * S * 4
              + (8 << 20))
    vmem_limit = int(min(112 << 20, max(32 << 20, budget)))

    smem_spec = pl.BlockSpec(memory_space=pltpu.MemorySpace.SMEM)

    out = pl.pallas_call(
        _sia_kernel,
        out_shape=jax.ShapeDtypeStruct((Np, S), x.dtype),
        grid_spec=pltpu.PrefetchScalarGridSpec(
            num_scalar_prefetch=0,
            grid=(NB,),
            in_specs=[
                smem_spec,                                    # w1
                smem_spec,                                    # b1
                pl.BlockSpec((Nb, C * S), lambda n: (n, 0)),  # x block
                # Constant block index -> fetched once (resident operator).
                # (pipeline_mode=pl.Buffered(1) would single-buffer it and
                #  save one (2S,S) VMEM copy for large S on v7x; left at the
                #  default here since the operator is ~0.5 MiB at S=256.)
                pl.BlockSpec((2 * S, S), lambda n: (0, 0)),   # A (resident)
            ],
            out_specs=pl.BlockSpec((Nb, S), lambda n: (n, 0)),
            scratch_shapes=[pltpu.VMEM((Nb, 2 * S), jnp.float32)],
        ),
        compiler_params=pltpu.CompilerParams(
            # Batch-block axis is fully independent -> shard across v7x's 2 TCs.
            dimension_semantics=("parallel",),
            vmem_limit_bytes=vmem_limit),
    )(w1, b1, x2, A)

    return out[:N].reshape(N, 1, H, W)


def _reference(x, w_att, b_att, w_conv, kernel_size=7):
    """Pure-JAX reference mirroring the PyTorch forward."""
    P = 3 if kernel_size == 7 else 1
    dn = ("NCHW", "OIHW", "NCHW")
    maxout = jnp.max(x, axis=1, keepdims=True)
    fm = jax.lax.conv_general_dilated(
        x, w_att, (1, 1), "VALID", dimension_numbers=dn) + b_att.reshape(1, 1, 1, 1)
    cat = jnp.concatenate([fm, maxout], axis=1)
    y = jax.lax.conv_general_dilated(
        cat, w_conv, (1, 1), [(P, P), (P, P)], dimension_numbers=dn)
    return jax.nn.sigmoid(y)


if __name__ == "__main__":
    # Small shapes consistent with the module: batch=2, channels=4, spatial=16.
    N, C, H, W = 2, 4, 16, 16
    K = 7

    key = jax.random.PRNGKey(0)
    kx, kw1, kb1, kw2 = jax.random.split(key, 4)

    x = jax.random.normal(kx, (N, C, H, W), dtype=jnp.float32)
    # attconv: Conv2d(C, 1, kernel_size=1) -> weight (1, C, 1, 1), bias (1,)
    w_att = jax.random.normal(kw1, (1, C, 1, 1), dtype=jnp.float32) * 0.3
    b_att = jax.random.normal(kb1, (1,), dtype=jnp.float32) * 0.1
    # conv: Conv2d(2, 1, 7, padding=3, bias=False) -> weight (1, 2, 7, 7)
    w_conv = jax.random.normal(kw2, (1, 2, K, K), dtype=jnp.float32) * 0.1

    out = spatial_integration_attention(x, w_att, b_att, w_conv, kernel_size=K)
    out = jax.block_until_ready(out)

    ref = _reference(x, w_att, b_att, w_conv, kernel_size=K)
    assert out.shape == (N, 1, H, W), out.shape
    # Tolerance allows f32 MXU matmul rounding (multi-pass f32 accumulation).
    assert jnp.allclose(out, ref, atol=1e-4, rtol=1e-4), (
        float(jnp.max(jnp.abs(out - ref))))

    print("KERNEL_OK")
</pallas_src>

<mosaic_0001>
module attributes {stable_mosaic.version = 11 : i64} {
  func.func @_sia_kernel(%arg0: i32, %arg1: memref<4xf32, #tpu.memory_space<smem>>, %arg2: memref<1xf32, #tpu.memory_space<smem>>, %arg3: memref<8x1024xf32, #tpu.memory_space<vmem>>, %arg4: memref<512x256xf32, #tpu.memory_space<vmem>>, %arg5: memref<8x256xf32, #tpu.memory_space<vmem>>, %arg6: memref<8x512xf32, #tpu.memory_space<vmem>>) attributes {dimension_semantics = [#tpu.dimension_semantics<parallel>], iteration_bounds = array<i64: 1>, scalar_prefetch = 0 : i64, scratch_operands = 1 : i64, tpu.core_type = #tpu.core_type<tc>, window_params = [{transform_indices = @transform_0, window_bounds = array<i64: 4>}, {transform_indices = @transform_1, window_bounds = array<i64: 1>}, {transform_indices = @transform_2, window_bounds = array<i64: 8, 1024>}, {pipeline_mode = #tpu.pipeline_mode<synchronous>, transform_indices = @transform_3, window_bounds = array<i64: 512, 256>}, {transform_indices = @transform_4, window_bounds = array<i64: 8, 256>}]} {
    %c0 = arith.constant 0 : index
    %c0_0 = arith.constant 0 : index
    %0 = vector.load %arg3[%c0, %c0_0] : memref<8x1024xf32, #tpu.memory_space<vmem>>, vector<8x256xf32>
    %c0_1 = arith.constant 0 : index
    %1 = memref.load %arg1[%c0_1] : memref<4xf32, #tpu.memory_space<smem>>
    %2 = vector.broadcast %1 : f32 to vector<8x256xf32>
    %3 = arith.mulf %0, %2 : vector<8x256xf32>
    %c0_2 = arith.constant 0 : index
    %c256 = arith.constant 256 : index
    %4 = vector.load %arg3[%c0_2, %c256] : memref<8x1024xf32, #tpu.memory_space<vmem>>, vector<8x256xf32>
    %5 = arith.maximumf %0, %4 : vector<8x256xf32>
    %c1 = arith.constant 1 : index
    %6 = memref.load %arg1[%c1] : memref<4xf32, #tpu.memory_space<smem>>
    %7 = vector.broadcast %6 : f32 to vector<8x256xf32>
    %8 = arith.mulf %4, %7 : vector<8x256xf32>
    %9 = arith.addf %3, %8 : vector<8x256xf32>
    %c0_3 = arith.constant 0 : index
    %c512 = arith.constant 512 : index
    %10 = vector.load %arg3[%c0_3, %c512] : memref<8x1024xf32, #tpu.memory_space<vmem>>, vector<8x256xf32>
    %11 = arith.maximumf %5, %10 : vector<8x256xf32>
    %c2 = arith.constant 2 : index
    %12 = memref.load %arg1[%c2] : memref<4xf32, #tpu.memory_space<smem>>
    %13 = vector.broadcast %12 : f32 to vector<8x256xf32>
    %14 = arith.mulf %10, %13 : vector<8x256xf32>
    %15 = arith.addf %9, %14 : vector<8x256xf32>
    %c0_4 = arith.constant 0 : index
    %c768 = arith.constant 768 : index
    %16 = vector.load %arg3[%c0_4, %c768] : memref<8x1024xf32, #tpu.memory_space<vmem>>, vector<8x256xf32>
    %17 = arith.maximumf %11, %16 : vector<8x256xf32>
    %c3 = arith.constant 3 : index
    %18 = memref.load %arg1[%c3] : memref<4xf32, #tpu.memory_space<smem>>
    %19 = vector.broadcast %18 : f32 to vector<8x256xf32>
    %20 = arith.mulf %16, %19 : vector<8x256xf32>
    %21 = arith.addf %15, %20 : vector<8x256xf32>
    %c0_5 = arith.constant 0 : index
    %22 = memref.load %arg2[%c0_5] : memref<1xf32, #tpu.memory_space<smem>>
    %23 = vector.broadcast %22 : f32 to vector<8x256xf32>
    %24 = arith.addf %21, %23 : vector<8x256xf32>
    %c0_6 = arith.constant 0 : index
    %c0_7 = arith.constant 0 : index
    %25 = vector.load %arg6[%c0_6, %c0_7] : memref<8x512xf32, #tpu.memory_space<vmem>>, vector<8x256xf32>
    tpu.vector_store %arg6[%c0_6, %c0_7], %24 {strides = array<i32>} : memref<8x512xf32, #tpu.memory_space<vmem>>, vector<8x256xf32>,
    %c0_8 = arith.constant 0 : index
    %c256_9 = arith.constant 256 : index
    %26 = vector.load %arg6[%c0_8, %c256_9] : memref<8x512xf32, #tpu.memory_space<vmem>>, vector<8x256xf32>
    tpu.vector_store %arg6[%c0_8, %c256_9], %17 {strides = array<i32>} : memref<8x512xf32, #tpu.memory_space<vmem>>, vector<8x256xf32>,
    %c0_10 = arith.constant 0 : index
    %c0_11 = arith.constant 0 : index
    %27 = vector.load %arg6[%c0_10, %c0_11] : memref<8x512xf32, #tpu.memory_space<vmem>>, vector<8x512xf32>
    %c0_12 = arith.constant 0 : index
    %c0_13 = arith.constant 0 : index
    %28 = vector.load %arg4[%c0_12, %c0_13] : memref<512x256xf32, #tpu.memory_space<vmem>>, vector<512x256xf32>
    %cst = arith.constant dense<0.000000e+00> : vector<8x256xf32>
    %29 = tpu.matmul %27, %28, %cst {dimension_numbers = #tpu.dot_dimension_numbers<[1], [0], [0], [1], [0, 0, 1, 1], [], []>} : vector<8x512xf32>, vector<512x256xf32>, vector<8x256xf32> -> vector<8x256xf32>
    %30 = arith.negf %29 : vector<8x256xf32>
    %31 = math.exp %30 : vector<8x256xf32>
    %cst_14 = arith.constant 1.000000e+00 : f32
    %32 = vector.broadcast %cst_14 : f32 to vector<8x256xf32>
    %33 = arith.addf %32, %31 : vector<8x256xf32>
    %34 = arith.divf %32, %33 : vector<8x256xf32>
    %c0_15 = arith.constant 0 : index
    %c0_16 = arith.constant 0 : index
    %35 = vector.load %arg5[%c0_15, %c0_16] : memref<8x256xf32, #tpu.memory_space<vmem>>, vector<8x256xf32>
    tpu.vector_store %arg5[%c0_15, %c0_16], %34 {strides = array<i32>} : memref<8x256xf32, #tpu.memory_space<vmem>>, vector<8x256xf32>,
    return
  }
  func.func @transform_0(%arg0: i32) -> i32 {
    %c0_i32 = arith.constant 0 : i32
    %c0_i32_0 = arith.constant 0 : i32
    return %c0_i32 : i32
  }
  func.func @transform_1(%arg0: i32) -> i32 {
    %c0_i32 = arith.constant 0 : i32
    %c0_i32_0 = arith.constant 0 : i32
    return %c0_i32 : i32
  }
  func.func @transform_2(%arg0: i32) -> (i32, i32) {
    %c0_i32 = arith.constant 0 : i32
    %c0_i32_0 = arith.constant 0 : i32
    return %arg0, %c0_i32 : i32, i32
  }
  func.func @transform_3(%arg0: i32) -> (i32, i32) {
    %c0_i32 = arith.constant 0 : i32
    %c0_i32_0 = arith.constant 0 : i32
    %c0_i32_1 = arith.constant 0 : i32
    return %c0_i32, %c0_i32_0 : i32, i32
  }
  func.func @transform_4(%arg0: i32) -> (i32, i32) {
    %c0_i32 = arith.constant 0 : i32
    %c0_i32_0 = arith.constant 0 : i32
    return %arg0, %c0_i32 : i32, i32
  }
}

</mosaic_0001>

<llo_original>
// kernel: tpu_custom_call.1
$region0: #{tpu_custom_call.1}
  #allocation0 [shape = 'u32[]', space=smem, size = 0x4, offset = 0x4, fixed_abs, tag = 'smem constant byte address 0x4 - core index']
  #allocation1 [shape = 'u32[144,128]{1,0:T(1,128)}', space=vmem, size = 0x12000, scoped, tag = 'internal scratch']
  #allocation2 [shape = 'f32[8,512]{1,0:T(8,128)}', space=vmem, size = 0x4000, scoped, tag = 'scratch operand']
  #allocation3 [shape = 'f32[1]{0:T(128)S(6)}', space=smem, size = 0x200, scoped, tag = 'scoped memory for tpu_custom_call.1']
  %s0 = inlined_call_operand.vmem [shape: f32[4], index: 0, kind: input, shape index: {}]
  %s1 = inlined_call_operand.<no memory space> [shape: f32[1], index: 1, kind: input, shape index: {}]
  %s2 = inlined_call_operand.hbm [shape: f32[8,1024], index: 2, kind: input, shape index: {}]
  %s3 = inlined_call_operand.hbm [shape: f32[512,256], index: 3, kind: input, shape index: {}]
  %s4 = inlined_call_operand.hbm [shape: f32[8,256], index: 4, kind: output, shape index: {}]
  %s5 = sld [smem:[#allocation0]]
  $region38: #{tpu_custom_call.1} parent=0
    _
  %s7 = ssub.s32 1, %s5
  %s8 = scalar_select 0, %s7, %s5
  %9 = sst [smem:[#allocation3]] %s1
  $region1: #{tpu_custom_call.1} parent=0
    #allocation4 [shape = 'u8[512]{0}', space=smem, size = 0x200, scoped, tag = 'input window, operand 0, single buffered']
    #allocation5 [shape = 's32[1]{0}', space=sflag, size = 0x4, scoped, tag = 'scoped memory for tpu_custom_call.1']
    #allocation6 [shape = 's32[1]{0}', space=sflag, size = 0x4, scoped, tag = 'scoped memory for tpu_custom_call.1']
    #allocation7 [shape = 's32[1]{0}', space=sflag, size = 0x4, scoped, tag = 'scoped memory for tpu_custom_call.1']
    #allocation8 [shape = 'u8[32768]{0}', space=vmem, size = 0x8000, scoped, tag = 'input window, operand 2, single buffered']
    #allocation9 [shape = 'u8[524288]{0}', space=vmem, size = 0x80000, scoped, tag = 'input window, operand 3, single buffered']
    #allocation10 [shape = 's32[1]{0}', space=sflag, size = 0x4, scoped, tag = 'scoped memory for tpu_custom_call.1']
    #allocation11 [shape = 'u8[8192]{0}', space=vmem, size = 0x2000, scoped, tag = 'output window, operand 0, single buffered']
    %10 = vsyncpa [#allocation7], 0
    %11 = vsyncpa [#allocation5], 0
    %12 = vsyncpa [#allocation10], 0
    %13 = vsyncpa [#allocation6], 0
    // Predicated region
    $region2: #{tpu_custom_call.1} parent=1 // pred_check
      _
    $region3: #{tpu_custom_call.1} parent=1 // pred_check_branch
      %15 = sbr.rel (0) target = $region5
    $region4: #{tpu_custom_call.1} parent=1 // pred_region
      %s17 = ssub.s32 16, 16
      %18 = vsyncadd [#allocation7], %s17
      %s20 = sshll.u32 %s0, 4
      %s21 = int_to_ptr.vmem [resolvable:$true] %s20
      %23 = dma.vmem_to_smem %s21, 16, [#allocation4], [#allocation7]
    $region5: #{tpu_custom_call.1} parent=1 // pred_fallthru
      _
    // Predicated region
    $region6: #{tpu_custom_call.1} parent=1 // pred_check
      _
    $region7: #{tpu_custom_call.1} parent=1 // pred_check_branch
      %25 = sbr.rel (0) target = $region9
    $region8: #{tpu_custom_call.1} parent=1 // pred_region
      _
    $region9: #{tpu_custom_call.1} parent=1 // pred_fallthru
      _
    // Predicated region
    $region10: #{tpu_custom_call.1} parent=1 // pred_check
      _
    $region11: #{tpu_custom_call.1} parent=1 // pred_check_branch
      %27 = sbr.rel (0) target = $region13
    $region12: #{tpu_custom_call.1} parent=1 // pred_region
      %s29 = ssub.s32 1024, 1024
      %30 = vsyncadd [#allocation5], %s29
      %s32 = sshll.u32 [#allocation8], 4
      %s33 = int_to_ptr.vmem [resolvable:$true] %s32
      %35 = dma.hbm_to_vmem [thread:$0]  %s2, 1024, %s33, [#allocation5]
    $region13: #{tpu_custom_call.1} parent=1 // pred_fallthru
      _
    // Predicated region
    $region14: #{tpu_custom_call.1} parent=1 // pred_check
      _
    $region15: #{tpu_custom_call.1} parent=1 // pred_check_branch
      %37 = sbr.rel (0) target = $region17
    $region16: #{tpu_custom_call.1} parent=1 // pred_region
      %s39 = ssub.s32 16384, 16384
      %40 = vsyncadd [#allocation10], %s39
      %s41 = sshll.u32 [#allocation9], 4
      %s42 = int_to_ptr.vmem [resolvable:$true] %s41
      %47 = dma.hbm_to_vmem [thread:$0]  %s3, 16384, %s42, [#allocation10], 256, 256, 16
    $region17: #{tpu_custom_call.1} parent=1 // pred_fallthru
      _
    // Predicated region
    $region18: #{tpu_custom_call.1} parent=1 // pred_check
      _
    $region19: #{tpu_custom_call.1} parent=1 // pred_check_branch
      %49 = sbr.rel (0) target = $region21
    $region20: #{tpu_custom_call.1} parent=1 // pred_region
      %50 = dma.done [#allocation7], 16
    $region21: #{tpu_custom_call.1} parent=1 // pred_fallthru
      _
    // Predicated region
    $region22: #{tpu_custom_call.1} parent=1 // pred_check
      _
    $region23: #{tpu_custom_call.1} parent=1 // pred_check_branch
      %52 = sbr.rel (0) target = $region25
    $region24: #{tpu_custom_call.1} parent=1 // pred_region
      %53 = dma.done [#allocation5], 1024
    $region25: #{tpu_custom_call.1} parent=1 // pred_fallthru
      _
    // Predicated region
    $region26: #{tpu_custom_call.1} parent=1 // pred_check
      _
    $region27: #{tpu_custom_call.1} parent=1 // pred_check_branch
      %55 = sbr.rel (0) target = $region29
    $region28: #{tpu_custom_call.1} parent=1 // pred_region
      %56 = dma.done [#allocation10], 16384
    $region29: #{tpu_custom_call.1} parent=1 // pred_fallthru
      _
    %57 = sfence
    %v58 = vld [vmem:[#allocation8] sm:$0xff]
    %v59 = vld [vmem:[#allocation8 + $0x8] sm:$0xff]
    %s60 = sld [smem:[#allocation4]]
    %v61 = vstv %s60
    %v62 = vmul.f32 %v58, %v61
    %v63 = vmul.f32 %v59, %v61
    %v64 = vld [vmem:[#allocation8 + $0x10] sm:$0xff]
    %v65 = vld [vmem:[#allocation8 + $0x18] sm:$0xff]
    %v66 = vmax.f32 %v58, %v64
    %v67 = vmax.f32 %v59, %v65
    %s68 = sld [smem:[#allocation4 + $0x1]]
    %v69 = vstv %s68
    %v70 = vmul.f32 %v64, %v69
    %v71 = vmul.f32 %v65, %v69
    %v72 = vadd.f32 %v62, %v70
    %v73 = vadd.f32 %v63, %v71
    %v74 = vld [vmem:[#allocation8 + $0x20] sm:$0xff]
    %v75 = vld [vmem:[#allocation8 + $0x28] sm:$0xff]
    %v76 = vmax.f32 %v66, %v74
    %v77 = vmax.f32 %v67, %v75
    %s78 = sld [smem:[#allocation4 + $0x2]]
    %v79 = vstv %s78
    %v80 = vmul.f32 %v74, %v79
    %v81 = vmul.f32 %v75, %v79
    %v82 = vadd.f32 %v72, %v80
    %v83 = vadd.f32 %v73, %v81
    %v84 = vld [vmem:[#allocation8 + $0x30] sm:$0xff]
    %v85 = vld [vmem:[#allocation8 + $0x38] sm:$0xff]
    %v86 = vmax.f32 %v76, %v84
    %v87 = vmax.f32 %v77, %v85
    %s88 = sld [smem:[#allocation4 + $0x3]]
    %v89 = vstv %s88
    %v90 = vmul.f32 %v84, %v89
    %v91 = vmul.f32 %v85, %v89
    %v92 = vadd.f32 %v82, %v90
    %v93 = vadd.f32 %v83, %v91
    %s94 = sld [smem:[#allocation3]]
    %v95 = vstv %s94
    %v96 = vadd.f32 %v92, %v95
    %v97 = vadd.f32 %v93, %v95
    %98 = vst [vmem:[#allocation2] sm:$0xff] %v96
    %99 = vst [vmem:[#allocation2 + $0x8] sm:$0xff] %v97
    %100 = vst [vmem:[#allocation2 + $0x10] sm:$0xff] %v86
    %101 = vst [vmem:[#allocation2 + $0x18] sm:$0xff] %v87
    %v102 = vld [vmem:[#allocation2] sm:$0xff]
    %v103 = vld [vmem:[#allocation2 + $0x8] sm:$0xff]
    %v104 = vld [vmem:[#allocation2 + $0x10] sm:$0xff]
    %v105 = vld [vmem:[#allocation2 + $0x18] sm:$0xff]
    %v106 = vld [vmem:[#allocation9] sm:$0xff]
    %v107 = vld [vmem:[#allocation9 + $0x8] sm:$0xff]
    %v108 = vld [vmem:[#allocation9 + $0x10] sm:$0xff]
    %v109 = vld [vmem:[#allocation9 + $0x18] sm:$0xff]
    %v110 = vld [vmem:[#allocation9 + $0x20] sm:$0xff]
    %v111 = vld [vmem:[#allocation9 + $0x28] sm:$0xff]
    %v112 = vld [vmem:[#allocation9 + $0x30] sm:$0xff]
    %v113 = vld [vmem:[#allocation9 + $0x38] sm:$0xff]
    %v114 = vld [vmem:[#allocation9 + $0x40] sm:$0xff]
    %v115 = vld [vmem:[#allocation9 + $0x48] sm:$0xff]
    %v116 = vld [vmem:[#allocation9 + $0x50] sm:$0xff]
    %v117 = vld [vmem:[#allocation9 + $0x58] sm:$0xff]
    %v118 = vld [vmem:[#allocation9 + $0x60] sm:$0xff]
    %v119 = vld [vmem:[#allocation9 + $0x68] sm:$0xff]
    %v120 = vld [vmem:[#allocation9 + $0x70] sm:$0xff]
    %v121 = vld [vmem:[#allocation9 + $0x78] sm:$0xff]
    %v122 = vld [vmem:[#allocation9 + $0x80] sm:$0xff]
    %v123 = vld [vmem:[#allocation9 + $0x88] sm:$0xff]
    %v124 = vld [vmem:[#allocation9 + $0x90] sm:$0xff]
    %v125 = vld [vmem:[#allocation9 + $0x98] sm:$0xff]
    %v126 = vld [vmem:[#allocation9 + $0xa0] sm:$0xff]
    %v127 = vld [vmem:[#allocation9 + $0xa8] sm:$0xff]
    %v128 = vld [vmem:[#allocation9 + $0xb0] sm:$0xff]
    %v129 = vld [vmem:[#allocation9 + $0xb8] sm:$0xff]
    %v130 = vld [vmem:[#allocation9 + $0xc0] sm:$0xff]
    %v131 = vld [vmem:[#allocation9 + $0xc8] sm:$0xff]
    %v132 = vld [vmem:[#allocation9 + $0xd0] sm:$0xff]
    %v133 = vld [vmem:[#allocation9 + $0xd8] sm:$0xff]
    %v134 = vld [vmem:[#allocation9 + $0xe0] sm:$0xff]
    %v135 = vld [vmem:[#allocation9 + $0xe8] sm:$0xff]
    %v136 = vld [vmem:[#allocation9 + $0xf0] sm:$0xff]
    %v137 = vld [vmem:[#allocation9 + $0xf8] sm:$0xff]
    %v138 = vld [vmem:[#allocation9 + $0x100] sm:$0xff]
    %v139 = vld [vmem:[#allocation9 + $0x108] sm:$0xff]
    %v140 = vld [vmem:[#allocation9 + $0x110] sm:$0xff]
    %v141 = vld [vmem:[#allocation9 + $0x118] sm:$0xff]
    %v142 = vld [vmem:[#allocation9 + $0x120] sm:$0xff]
    %v143 = vld [vmem:[#allocation9 + $0x128] sm:$0xff]
    %v144 = vld [vmem:[#allocation9 + $0x130] sm:$0xff]
    %v145 = vld [vmem:[#allocation9 + $0x138] sm:$0xff]
    %v146 = vld [vmem:[#allocation9 + $0x140] sm:$0xff]
    %v147 = vld [vmem:[#allocation9 + $0x148] sm:$0xff]
    %v148 = vld [vmem:[#allocation9 + $0x150] sm:$0xff]
    %v149 = vld [vmem:[#allocation9 + $0x158] sm:$0xff]
    %v150 = vld [vmem:[#allocation9 + $0x160] sm:$0xff]
    %v151 = vld [vmem:[#allocation9 + $0x168] sm:$0xff]
    %v152 = vld [vmem:[#allocation9 + $0x170] sm:$0xff]
    %v153 = vld [vmem:[#allocation9 + $0x178] sm:$0xff]
    %v154 = vld [vmem:[#allocation9 + $0x180] sm:$0xff]
    %v155 = vld [vmem:[#allocation9 + $0x188] sm:$0xff]
    %v156 = vld [vmem:[#allocation9 + $0x190] sm:$0xff]
    %v157 = vld [vmem:[#allocation9 + $0x198] sm:$0xff]
    %v158 = vld [vmem:[#allocation9 + $0x1a0] sm:$0xff]
    %v159 = vld [vmem:[#allocation9 + $0x1a8] sm:$0xff]
    %v160 = vld [vmem:[#allocation9 + $0x1b0] sm:$0xff]
    %v161 = vld [vmem:[#allocation9 + $0x1b8] sm:$0xff]
    %v162 = vld [vmem:[#allocation9 + $0x1c0] sm:$0xff]
    %v163 = vld [vmem:[#allocation9 + $0x1c8] sm:$0xff]
    %v164 = vld [vmem:[#allocation9 + $0x1d0] sm:$0xff]
    %v165 = vld [vmem:[#allocation9 + $0x1d8] sm:$0xff]
    %v166 = vld [vmem:[#allocation9 + $0x1e0] sm:$0xff]
    %v167 = vld [vmem:[#allocation9 + $0x1e8] sm:$0xff]
    %v168 = vld [vmem:[#allocation9 + $0x1f0] sm:$0xff]
    %v169 = vld [vmem:[#allocation9 + $0x1f8] sm:$0xff]
    %v170 = vld [vmem:[#allocation9 + $0x200] sm:$0xff]
    %v171 = vld [vmem:[#allocation9 + $0x208] sm:$0xff]
    %v172 = vld [vmem:[#allocation9 + $0x210] sm:$0xff]
    %v173 = vld [vmem:[#allocation9 + $0x218] sm:$0xff]
    %v174 = vld [vmem:[#allocation9 + $0x220] sm:$0xff]
    %v175 = vld [vmem:[#allocation9 + $0x228] sm:$0xff]
    %v176 = vld [vmem:[#allocation9 + $0x230] sm:$0xff]
    %v177 = vld [vmem:[#allocation9 + $0x238] sm:$0xff]
    %v178 = vld [vmem:[#allocation9 + $0x240] sm:$0xff]
    %v179 = vld [vmem:[#allocation9 + $0x248] sm:$0xff]
    %v180 = vld [vmem:[#allocation9 + $0x250] sm:$0xff]
    %v181 = vld [vmem:[#allocation9 + $0x258] sm:$0xff]
    %v182 = vld [vmem:[#allocation9 + $0x260] sm:$0xff]
    %v183 = vld [vmem:[#allocation9 + $0x268] sm:$0xff]
    %v184 = vld [vmem:[#allocation9 + $0x270] sm:$0xff]
    %v185 = vld [vmem:[#allocation9 + $0x278] sm:$0xff]
    %v186 = vld [vmem:[#allocation9 + $0x280] sm:$0xff]
    %v187 = vld [vmem:[#allocation9 + $0x288] sm:$0xff]
    %v188 = vld [vmem:[#allocation9 + $0x290] sm:$0xff]
    %v189 = vld [vmem:[#allocation9 + $0x298] sm:$0xff]
    %v190 = vld [vmem:[#allocation9 + $0x2a0] sm:$0xff]
    %v191 = vld [vmem:[#allocation9 + $0x2a8] sm:$0xff]
    %v192 = vld [vmem:[#allocation9 + $0x2b0] sm:$0xff]
    %v193 = vld [vmem:[#allocation9 + $0x2b8] sm:$0xff]
    %v194 = vld [vmem:[#allocation9 + $0x2c0] sm:$0xff]
    %v195 = vld [vmem:[#allocation9 + $0x2c8] sm:$0xff]
    %v196 = vld [vmem:[#allocation9 + $0x2d0] sm:$0xff]
    %v197 = vld [vmem:[#allocation9 + $0x2d8] sm:$0xff]
    %v198 = vld [vmem:[#allocation9 + $0x2e0] sm:$0xff]
    %v199 = vld [vmem:[#allocation9 + $0x2e8] sm:$0xff]
    %v200 = vld [vmem:[#allocation9 + $0x2f0] sm:$0xff]
    %v201 = vld [vmem:[#allocation9 + $0x2f8] sm:$0xff]
    %v202 = vld [vmem:[#allocation9 + $0x300] sm:$0xff]
    %v203 = vld [vmem:[#allocation9 + $0x308] sm:$0xff]
    %v204 = vld [vmem:[#allocation9 + $0x310] sm:$0xff]
    %v205 = vld [vmem:[#allocation9 + $0x318] sm:$0xff]
    %v206 = vld [vmem:[#allocation9 + $0x320] sm:$0xff]
    %v207 = vld [vmem:[#allocation9 + $0x328] sm:$0xff]
    %v208 = vld [vmem:[#allocation9 + $0x330] sm:$0xff]
    %v209 = vld [vmem:[#allocation9 + $0x338] sm:$0xff]
    %v210 = vld [vmem:[#allocation9 + $0x340] sm:$0xff]
    %v211 = vld [vmem:[#allocation9 + $0x348] sm:$0xff]
    %v212 = vld [vmem:[#allocation9 + $0x350] sm:$0xff]
    %v213 = vld [vmem:[#allocation9 + $0x358] sm:$0xff]
    %v214 = vld [vmem:[#allocation9 + $0x360] sm:$0xff]
    %v215 = vld [vmem:[#allocation9 + $0x368] sm:$0xff]
    %v216 = vld [vmem:[#allocation9 + $0x370] sm:$0xff]
    %v217 = vld [vmem:[#allocation9 + $0x378] sm:$0xff]
    %v218 = vld [vmem:[#allocation9 + $0x380] sm:$0xff]
    %v219 = vld [vmem:[#allocation9 + $0x388] sm:$0xff]
    %v220 = vld [vmem:[#allocation9 + $0x390] sm:$0xff]
    %v221 = vld [vmem:[#allocation9 + $0x398] sm:$0xff]
    %v222 = vld [vmem:[#allocation9 + $0x3a0] sm:$0xff]
    %v223 = vld [vmem:[#allocation9 + $0x3a8] sm:$0xff]
    %v224 = vld [vmem:[#allocation9 + $0x3b0] sm:$0xff]
    %v225 = vld [vmem:[#allocation9 + $0x3b8] sm:$0xff]
    %v226 = vld [vmem:[#allocation9 + $0x3c0] sm:$0xff]
    %v227 = vld [vmem:[#allocation9 + $0x3c8] sm:$0xff]
    %v228 = vld [vmem:[#allocation9 + $0x3d0] sm:$0xff]
    %v229 = vld [vmem:[#allocation9 + $0x3d8] sm:$0xff]
    %v230 = vld [vmem:[#allocation9 + $0x3e0] sm:$0xff]
    %v231 = vld [vmem:[#allocation9 + $0x3e8] sm:$0xff]
    %v232 = vld [vmem:[#allocation9 + $0x3f0] sm:$0xff]
    %v233 = vld [vmem:[#allocation9 + $0x3f8] sm:$0xff]
    %234 = vmatprep.subr.mxu0 %v137
    %235 = vmatpush1.msra.mxu0 %v136
    %236 = vmatprep.subr.mxu0 %v135
    %237 = vmatpush1.msra.mxu0 %v134
    %238 = vmatprep.subr.mxu0 %v133
    %239 = vmatpush1.msra.mxu0 %v132
    %240 = vmatprep.subr.mxu0 %v131
    %241 = vmatpush1.msra.mxu0 %v130
    %242 = vmatprep.subr.mxu0 %v129
    %243 = vmatpush1.msra.mxu0 %v128
    %244 = vmatprep.subr.mxu0 %v127
    %245 = vmatpush1.msra.mxu0 %v126
    %246 = vmatprep.subr.mxu0 %v125
    %247 = vmatpush1.msra.mxu0 %v124
    %248 = vmatprep.subr.mxu0 %v123
    %249 = vmatpush1.msra.mxu0 %v122
    %250 = vmatprep.subr.mxu0 %v121
    %251 = vmatpush1.msra.mxu0 %v120
    %252 = vmatprep.subr.mxu0 %v119
    %253 = vmatpush1.msra.mxu0 %v118
    %254 = vmatprep.subr.mxu0 %v117
    %255 = vmatpush1.msra.mxu0 %v116
    %256 = vmatprep.subr.mxu0 %v115
    %257 = vmatpush1.msra.mxu0 %v114
    %258 = vmatprep.subr.mxu0 %v113
    %259 = vmatpush1.msra.mxu0 %v112
    %260 = vmatprep.subr.mxu0 %v111
    %261 = vmatpush1.msra.mxu0 %v110
    %262 = vmatprep.subr.mxu0 %v109
    %263 = vmatpush1.msra.mxu0 %v108
    %264 = vmatprep.subr.mxu0 %v107
    %265 = vmatpush1.msra.mxu0 %v106
    %266 = vmatprep.subr.mxu0 %v169
    %267 = vmatpush2.msra.mxu0 %v168
    %268 = vmatprep.subr.mxu0 %v167
    %269 = vmatpush2.msra.mxu0 %v166
    %270 = vmatprep.subr.mxu0 %v165
    %271 = vmatpush2.msra.mxu0 %v164
    %272 = vmatprep.subr.mxu0 %v163
    %273 = vmatpush2.msra.mxu0 %v162
    %274 = vmatprep.subr.mxu0 %v161
    %275 = vmatpush2.msra.mxu0 %v160
    %276 = vmatprep.subr.mxu0 %v159
    %277 = vmatpush2.msra.mxu0 %v158
    %278 = vmatprep.subr.mxu0 %v157
    %279 = vmatpush2.msra.mxu0 %v156
    %280 = vmatprep.subr.mxu0 %v155
    %281 = vmatpush2.msra.mxu0 %v154
    %282 = vmatprep.subr.mxu0 %v153
    %283 = vmatpush2.msra.mxu0 %v152
    %284 = vmatprep.subr.mxu0 %v151
    %285 = vmatpush2.msra.mxu0 %v150
    %286 = vmatprep.subr.mxu0 %v149
    %287 = vmatpush2.msra.mxu0 %v148
    %288 = vmatprep.subr.mxu0 %v147
    %289 = vmatpush2.msra.mxu0 %v146
    %290 = vmatprep.subr.mxu0 %v145
    %291 = vmatpush2.msra.mxu0 %v144
    %292 = vmatprep.subr.mxu0 %v143
    %293 = vmatpush2.msra.mxu0 %v142
    %294 = vmatprep.subr.mxu0 %v141
    %295 = vmatpush2.msra.mxu0 %v140
    %296 = vmatprep.subr.mxu0 %v139
    %297 = vmatpush2.msra.mxu0 %v138
    %298 = vmatprep.mubr.f32.mxu0 %v103
    %299 = vmatmul.mubr.f32.gmra.mxu0 %v102
    %v300 = vpop.f32.mrf.mxu0
    %v301 = vadd.f32 0.0, %v300
    %v302 = vpop.f32.mrf.mxu0
    %v303 = vadd.f32 0.0, %v302
    %304 = vdwg.mxu0
    %305 = vmatprep.subr.mxu0 %v201
    %306 = vmatpush1.msra.mxu0 %v200
    %307 = vmatprep.subr.mxu0 %v199
    %308 = vmatpush1.msra.mxu0 %v198
    %309 = vmatprep.subr.mxu0 %v197
    %310 = vmatpush1.msra.mxu0 %v196
    %311 = vmatprep.subr.mxu0 %v195
    %312 = vmatpush1.msra.mxu0 %v194
    %313 = vmatprep.subr.mxu0 %v193
    %314 = vmatpush1.msra.mxu0 %v192
    %315 = vmatprep.subr.mxu0 %v191
    %316 = vmatpush1.msra.mxu0 %v190
    %317 = vmatprep.subr.mxu0 %v189
    %318 = vmatpush1.msra.mxu0 %v188
    %319 = vmatprep.subr.mxu0 %v187
    %320 = vmatpush1.msra.mxu0 %v186
    %321 = vmatprep.subr.mxu0 %v185
    %322 = vmatpush1.msra.mxu0 %v184
    %323 = vmatprep.subr.mxu0 %v183
    %324 = vmatpush1.msra.mxu0 %v182
    %325 = vmatprep.subr.mxu0 %v181
    %326 = vmatpush1.msra.mxu0 %v180
    %327 = vmatprep.subr.mxu0 %v179
    %328 = vmatpush1.msra.mxu0 %v178
    %329 = vmatprep.subr.mxu0 %v177
    %330 = vmatpush1.msra.mxu0 %v176
    %331 = vmatprep.subr.mxu0 %v175
    %332 = vmatpush1.msra.mxu0 %v174
    %333 = vmatprep.subr.mxu0 %v173
    %334 = vmatpush1.msra.mxu0 %v172
    %335 = vmatprep.subr.mxu0 %v171
    %336 = vmatpush1.msra.mxu0 %v170
    %337 = vmatprep.subr.mxu0 %v233
    %338 = vmatpush2.msra.mxu0 %v232
    %339 = vmatprep.subr.mxu0 %v231
    %340 = vmatpush2.msra.mxu0 %v230
    %341 = vmatprep.subr.mxu0 %v229
    %342 = vmatpush2.msra.mxu0 %v228
    %343 = vmatprep.subr.mxu0 %v227
    %344 = vmatpush2.msra.mxu0 %v226
    %345 = vmatprep.subr.mxu0 %v225
    %346 = vmatpush2.msra.mxu0 %v224
    %347 = vmatprep.subr.mxu0 %v223
    %348 = vmatpush2.msra.mxu0 %v222
    %349 = vmatprep.subr.mxu0 %v221
    %350 = vmatpush2.msra.mxu0 %v220
    %351 = vmatprep.subr.mxu0 %v219
    %352 = vmatpush2.msra.mxu0 %v218
    %353 = vmatprep.subr.mxu0 %v217
    %354 = vmatpush2.msra.mxu0 %v216
    %355 = vmatprep.subr.mxu0 %v215
    %356 = vmatpush2.msra.mxu0 %v214
    %357 = vmatprep.subr.mxu0 %v213
    %358 = vmatpush2.msra.mxu0 %v212
    %359 = vmatprep.subr.mxu0 %v211
    %360 = vmatpush2.msra.mxu0 %v210
    %361 = vmatprep.subr.mxu0 %v209
    %362 = vmatpush2.msra.mxu0 %v208
    %363 = vmatprep.subr.mxu0 %v207
    %364 = vmatpush2.msra.mxu0 %v206
    %365 = vmatprep.subr.mxu0 %v205
    %366 = vmatpush2.msra.mxu0 %v204
    %367 = vmatprep.subr.mxu0 %v203
    %368 = vmatpush2.msra.mxu0 %v202
    %369 = vmatprep.mubr.f32.mxu0 %v105
    %370 = vmatmul.mubr.f32.gmra.mxu0 %v104
    %v371 = vpop.f32.mrf.mxu0
    %v372 = vadd.f32 %v301, %v371
    %v373 = vpop.f32.mrf.mxu0
    %v374 = vadd.f32 %v303, %v373
    %375 = vdwg.mxu0
    %v376 = vxor.u32 %v372, 2147483648
    %v377 = vxor.u32 %v374, 2147483648
    %v378 = vmul.f32 %v376, 1.442695
    %v379 = vpow.pop %v378
    %v380 = vmul.f32 %v377, 1.442695
    %v381 = vpow.pop %v380
    %v382 = vadd.f32 %v379, 1.0
    %v383 = vadd.f32 %v381, 1.0
    %v384 = vrcp.pop %v382
    %v385 = vmul.f32 1.0, %v384
    %v386 = vrcp.pop %v383
    %v387 = vmul.f32 1.0, %v386
    %388 = vst [vmem:[#allocation11] sm:$0xff] %v385
    %389 = vst [vmem:[#allocation11 + $0x8] sm:$0xff] %v387
    // Predicated region
    $region30: #{tpu_custom_call.1} parent=1 // pred_check
      _
    $region31: #{tpu_custom_call.1} parent=1 // pred_check_branch
      %391 = sbr.rel (0) target = $region33
    $region32: #{tpu_custom_call.1} parent=1 // pred_region
      %s393 = ssub.s32 256, 256
      %394 = vsyncadd [#allocation6], %s393
      %s396 = sshll.u32 [#allocation11], 4
      %s397 = int_to_ptr.vmem [resolvable:$true] %s396
      %399 = dma.vmem_to_hbm [thread:$0]  %s397, 256, %s4, [#allocation6]
    $region33: #{tpu_custom_call.1} parent=1 // pred_fallthru
      _
    // Predicated region
    $region34: #{tpu_custom_call.1} parent=1 // pred_check
      _
    $region35: #{tpu_custom_call.1} parent=1 // pred_check_branch
      %401 = sbr.rel (0) target = $region37
    $region36: #{tpu_custom_call.1} parent=1 // pred_region
      %402 = dma.done [#allocation6], 256
    $region37: #{tpu_custom_call.1} parent=1 // pred_fallthru
      _
    %403 = vsyncpa [#allocation5], 1
    %404 = vsyncpa [#allocation10], 1
    %405 = vsyncpa [#allocation6], 1
    %406 = vsyncpa [#allocation7], 1

</llo_original>
